<compile_context>
chip_gen: v7x
topology: tpu7x:2x2x1
jax: 0.10.0
libtpu: 0.0.40
codegen_flags: <defaults>
</compile_context>

<pallas_src>
import functools

import numpy as np
import jax
import jax.numpy as jnp
from jax import lax
from jax.experimental import pallas as pl
from jax.experimental.pallas import tpu as pltpu

_LANE = 128
_SUB = 8


def _dice_kernel(logits_ref, targets_ref, out_ref,
                 inter_acc, m1_acc, m2_acc,
                 *, d_true, tile_rows, k_steps, needs_mask):
    k = pl.program_id(1)          # reduction tile over flattened features

    # reset per-sample accumulators at the start of each sample's reduction
    @pl.when(k == 0)
    def _():
        inter_acc[...] = jnp.zeros_like(inter_acc)
        m1_acc[...] = jnp.zeros_like(m1_acc)
        m2_acc[...] = jnp.zeros_like(m2_acc)

    # hot path: load native dtype, cast to f32 in-kernel, sigmoid + product
    x = logits_ref[...].astype(jnp.float32)       # (tile_rows, 128)
    t = targets_ref[...].astype(jnp.float32)      # (tile_rows, 128)
    p = jax.nn.sigmoid(x)

    if needs_mask:
        # only the last k tile can be ragged; mask columns past the true D
        row_ids = lax.broadcasted_iota(jnp.int32, (tile_rows, _LANE), 0)
        lane_ids = lax.broadcasted_iota(jnp.int32, (tile_rows, _LANE), 1)
        idx_in_tile = row_ids * _LANE + lane_ids
        rem = d_true - (k_steps - 1) * tile_rows * _LANE   # static Python int
        full = tile_rows * _LANE
        limit = jnp.where(k == k_steps - 1, rem, full)     # scalar
        valid = idx_in_tile < limit
        p = jnp.where(valid, p, 0.0)
        t = jnp.where(valid, t, 0.0)

    prod = p * t

    # Partial reduce over the leading (major) axis only -> pure VPU vreg adds
    # into a vreg-shaped accumulator; defer the expensive cross-lane reduce.
    if tile_rows % _SUB == 0:
        def _partial(v):
            return jnp.sum(v.reshape(tile_rows // _SUB, _SUB, _LANE), axis=0)
    else:
        def _partial(v):
            return jnp.sum(v, axis=0, keepdims=True)       # (1, 128)

    inter_acc[...] += _partial(prod)
    m1_acc[...] += _partial(p)
    m2_acc[...] += _partial(t)

    # finalize this sample: single cross-lane reduce + dice formula
    @pl.when(k == k_steps - 1)
    def _():
        smooth = 0.001
        inter = jnp.sum(inter_acc[...])
        s1 = jnp.sum(m1_acc[...])
        s2 = jnp.sum(m2_acc[...])
        score = 2.0 * (inter + smooth) / (s1 + s2 + smooth)
        out_ref[...] = jnp.full((_SUB, _LANE), score, dtype=jnp.float32)


def cal_score(logits, targets, *, max_rows=4096):
    """Pallas equivalent of CalScore.forward(logits, targets).

    max_rows caps the per-block reduction tile (rows of 128 lanes). The
    default (4096 rows -> 2 MiB f32 / 1 MiB bf16 per input block, ~8 MiB
    double-buffered total) fits comfortably inside the scoped VMEM limit on
    v5e/v6e/v7x.
    """
    assert logits.shape == targets.shape
    n = logits.shape[0]
    d = int(np.prod(logits.shape[1:]))

    # Flatten each sample; keep native dtypes (cast happens inside the kernel).
    lf = jnp.reshape(logits, (n, d))
    tf = jnp.reshape(targets, (n, d))

    # Pad only to a multiple of 128 lanes (no pad at all when D % 128 == 0);
    # padded columns are masked out inside the kernel.
    d_pad = ((d + _LANE - 1) // _LANE) * _LANE
    if d_pad != d:
        lf = jnp.pad(lf, ((0, 0), (0, d_pad - d)))
        tf = jnp.pad(tf, ((0, 0), (0, d_pad - d)))
    dr = d_pad // _LANE
    lf = lf.reshape(n, dr, _LANE)
    tf = tf.reshape(n, dr, _LANE)

    # Tile rows: either the whole feature slab (block == full dim) or a large
    # multiple of 8 so the block satisfies the (8, 128) tiling constraint.
    if dr <= max_rows:
        tile_rows = dr
    else:
        tile_rows = max(_SUB, (max_rows // _SUB) * _SUB)
    k_steps = -(-dr // tile_rows)
    needs_mask = (k_steps * tile_rows * _LANE) != d
    acc_rows = _SUB if tile_rows % _SUB == 0 else 1

    kernel = functools.partial(
        _dice_kernel,
        d_true=d, tile_rows=tile_rows, k_steps=k_steps, needs_mask=needs_mask)

    out = pl.pallas_call(
        kernel,
        out_shape=jax.ShapeDtypeStruct((n, _SUB, _LANE), jnp.float32),
        grid_spec=pltpu.PrefetchScalarGridSpec(
            num_scalar_prefetch=0,
            grid=(n, k_steps),
            in_specs=[
                pl.BlockSpec((pl.Squeezed(), tile_rows, _LANE),
                             lambda i, k: (i, k, 0)),
                pl.BlockSpec((pl.Squeezed(), tile_rows, _LANE),
                             lambda i, k: (i, k, 0)),
            ],
            out_specs=pl.BlockSpec((pl.Squeezed(), _SUB, _LANE),
                                   lambda i, k: (i, 0, 0)),
            scratch_shapes=[
                pltpu.VMEM((acc_rows, _LANE), jnp.float32),  # sum(p * t)
                pltpu.VMEM((acc_rows, _LANE), jnp.float32),  # sum(p)
                pltpu.VMEM((acc_rows, _LANE), jnp.float32),  # sum(t)
            ],
        ),
        compiler_params=pltpu.CompilerParams(
            dimension_semantics=("parallel", "arbitrary"),
            vmem_limit_bytes=32 * 1024 * 1024),
    )(lf, tf)

    scores = out[:, 0, 0]                 # per-sample dice scores
    return jnp.sum(scores) / n


def _reference(logits, targets):
    n = logits.shape[0]
    smooth = 0.001
    probs = jax.nn.sigmoid(logits.astype(jnp.float32))
    m1 = probs.reshape(n, -1)
    m2 = targets.astype(jnp.float32).reshape(n, -1)
    inter = (m1 * m2).sum(1)
    score = 2.0 * (inter + smooth) / (m1.sum(1) + m2.sum(1) + smooth)
    return score.sum() / n


if __name__ == "__main__":
    key = jax.random.PRNGKey(0)
    k1, k2, k3, k4, k5, k6 = jax.random.split(key, 6)

    # 1) small aligned case (D = 4*16*16 = 1024, single reduction step)
    l1 = jax.random.normal(k1, (2, 4, 16, 16), dtype=jnp.float32)
    t1 = (jax.random.uniform(k2, (2, 4, 16, 16)) > 0.5).astype(jnp.float32)
    o1 = cal_score(l1, t1)
    jax.block_until_ready(o1)
    assert jnp.allclose(o1, _reference(l1, t1), rtol=1e-5, atol=1e-5), (
        o1, _reference(l1, t1))

    # 2) ragged case (D = 300, not a multiple of 128) -> in-kernel masking
    l2 = jax.random.normal(k3, (2, 3, 10, 10), dtype=jnp.float32)
    t2 = (jax.random.uniform(k4, (2, 3, 10, 10)) > 0.5).astype(jnp.float32)
    o2 = cal_score(l2, t2)
    jax.block_until_ready(o2)
    assert jnp.allclose(o2, _reference(l2, t2), rtol=1e-5, atol=1e-5), (
        o2, _reference(l2, t2))

    # 3) multi-k-step reduction path (D = 8192, 4 tiles of 16 rows)
    l3 = jax.random.normal(k5, (2, 8, 32, 32), dtype=jnp.float32)
    t3 = (jax.random.uniform(k6, (2, 8, 32, 32)) > 0.5).astype(jnp.float32)
    o3 = cal_score(l3, t3, max_rows=16)
    jax.block_until_ready(o3)
    assert jnp.allclose(o3, _reference(l3, t3), rtol=1e-5, atol=1e-5), (
        o3, _reference(l3, t3))

    print("KERNEL_OK")
</pallas_src>

<mosaic_0001>
module attributes {stable_mosaic.version = 11 : i64} {
  func.func @_dice_kernel(%arg0: i32, %arg1: i32, %arg2: memref<1x8x128xf32, #tpu.memory_space<vmem>>, %arg3: memref<1x8x128xf32, #tpu.memory_space<vmem>>, %arg4: memref<1x8x128xf32, #tpu.memory_space<vmem>>, %arg5: memref<8x128xf32, #tpu.memory_space<vmem>>, %arg6: memref<8x128xf32, #tpu.memory_space<vmem>>, %arg7: memref<8x128xf32, #tpu.memory_space<vmem>>) attributes {dimension_semantics = [#tpu.dimension_semantics<parallel>, #tpu.dimension_semantics<arbitrary>], iteration_bounds = array<i64: 2, 1>, scalar_prefetch = 0 : i64, scratch_operands = 3 : i64, tpu.core_type = #tpu.core_type<tc>, window_params = [{transform_indices = @transform_0, window_bounds = array<i64: 1, 8, 128>}, {transform_indices = @transform_1, window_bounds = array<i64: 1, 8, 128>}, {transform_indices = @transform_2, window_bounds = array<i64: 1, 8, 128>}]} {
    %c0_i32 = arith.constant 0 : i32
    %0 = arith.cmpi eq, %arg1, %c0_i32 : i32
    %1 = arith.extui %0 : i1 to i32
    %c0_i32_0 = arith.constant 0 : i32
    %2 = arith.cmpi ne, %1, %c0_i32_0 : i32
    scf.if %2 {
      %cst_23 = arith.constant 0.000000e+00 : f32
      %31 = vector.broadcast %cst_23 : f32 to vector<8x128xf32>
      %c0_24 = arith.constant 0 : index
      %c0_25 = arith.constant 0 : index
      %32 = vector.load %arg5[%c0_24, %c0_25] : memref<8x128xf32, #tpu.memory_space<vmem>>, vector<8x128xf32>
      tpu.vector_store %arg5[%c0_24, %c0_25], %31 {strides = array<i32>} : memref<8x128xf32, #tpu.memory_space<vmem>>, vector<8x128xf32>,
      %cst_26 = arith.constant 0.000000e+00 : f32
      %33 = vector.broadcast %cst_26 : f32 to vector<8x128xf32>
      %c0_27 = arith.constant 0 : index
      %c0_28 = arith.constant 0 : index
      %34 = vector.load %arg6[%c0_27, %c0_28] : memref<8x128xf32, #tpu.memory_space<vmem>>, vector<8x128xf32>
      tpu.vector_store %arg6[%c0_27, %c0_28], %33 {strides = array<i32>} : memref<8x128xf32, #tpu.memory_space<vmem>>, vector<8x128xf32>,
      %cst_29 = arith.constant 0.000000e+00 : f32
      %35 = vector.broadcast %cst_29 : f32 to vector<8x128xf32>
      %c0_30 = arith.constant 0 : index
      %c0_31 = arith.constant 0 : index
      %36 = vector.load %arg7[%c0_30, %c0_31] : memref<8x128xf32, #tpu.memory_space<vmem>>, vector<8x128xf32>
      tpu.vector_store %arg7[%c0_30, %c0_31], %35 {strides = array<i32>} : memref<8x128xf32, #tpu.memory_space<vmem>>, vector<8x128xf32>,
    } else {
    }
    %c0 = arith.constant 0 : index
    %c0_1 = arith.constant 0 : index
    %c0_2 = arith.constant 0 : index
    %3 = vector.load %arg2[%c0, %c0_1, %c0_2] : memref<1x8x128xf32, #tpu.memory_space<vmem>>, vector<1x8x128xf32>
    %4 = vector.shape_cast %3 : vector<1x8x128xf32> to vector<8x128xf32>
    %c0_3 = arith.constant 0 : index
    %c0_4 = arith.constant 0 : index
    %c0_5 = arith.constant 0 : index
    %5 = vector.load %arg3[%c0_3, %c0_4, %c0_5] : memref<1x8x128xf32, #tpu.memory_space<vmem>>, vector<1x8x128xf32>
    %6 = vector.shape_cast %5 : vector<1x8x128xf32> to vector<8x128xf32>
    %7 = arith.negf %4 : vector<8x128xf32>
    %8 = math.exp %7 : vector<8x128xf32>
    %cst = arith.constant 1.000000e+00 : f32
    %9 = vector.broadcast %cst : f32 to vector<8x128xf32>
    %10 = arith.addf %9, %8 : vector<8x128xf32>
    %11 = arith.divf %9, %10 : vector<8x128xf32>
    %12 = arith.mulf %11, %6 : vector<8x128xf32>
    %c0_6 = arith.constant 0 : index
    %c0_7 = arith.constant 0 : index
    %13 = vector.load %arg5[%c0_6, %c0_7] : memref<8x128xf32, #tpu.memory_space<vmem>>, vector<8x128xf32>
    %14 = vector.shape_cast %12 : vector<8x128xf32> to vector<1x8x128xf32>
    %cst_8 = arith.constant dense<0.000000e+00> : vector<8x128xf32>
    %15 = vector.multi_reduction <add>, %14, %cst_8 [0] : vector<1x8x128xf32> to vector<8x128xf32>
    %16 = arith.addf %13, %15 : vector<8x128xf32>
    %c0_9 = arith.constant 0 : index
    %c0_10 = arith.constant 0 : index
    %17 = vector.load %arg5[%c0_9, %c0_10] : memref<8x128xf32, #tpu.memory_space<vmem>>, vector<8x128xf32>
    tpu.vector_store %arg5[%c0_9, %c0_10], %16 {strides = array<i32>} : memref<8x128xf32, #tpu.memory_space<vmem>>, vector<8x128xf32>,
    %c0_11 = arith.constant 0 : index
    %c0_12 = arith.constant 0 : index
    %18 = vector.load %arg6[%c0_11, %c0_12] : memref<8x128xf32, #tpu.memory_space<vmem>>, vector<8x128xf32>
    %19 = vector.shape_cast %11 : vector<8x128xf32> to vector<1x8x128xf32>
    %cst_13 = arith.constant dense<0.000000e+00> : vector<8x128xf32>
    %20 = vector.multi_reduction <add>, %19, %cst_13 [0] : vector<1x8x128xf32> to vector<8x128xf32>
    %21 = arith.addf %18, %20 : vector<8x128xf32>
    %c0_14 = arith.constant 0 : index
    %c0_15 = arith.constant 0 : index
    %22 = vector.load %arg6[%c0_14, %c0_15] : memref<8x128xf32, #tpu.memory_space<vmem>>, vector<8x128xf32>
    tpu.vector_store %arg6[%c0_14, %c0_15], %21 {strides = array<i32>} : memref<8x128xf32, #tpu.memory_space<vmem>>, vector<8x128xf32>,
    %c0_16 = arith.constant 0 : index
    %c0_17 = arith.constant 0 : index
    %23 = vector.load %arg7[%c0_16, %c0_17] : memref<8x128xf32, #tpu.memory_space<vmem>>, vector<8x128xf32>
    %24 = vector.shape_cast %6 : vector<8x128xf32> to vector<1x8x128xf32>
    %cst_18 = arith.constant dense<0.000000e+00> : vector<8x128xf32>
    %25 = vector.multi_reduction <add>, %24, %cst_18 [0] : vector<1x8x128xf32> to vector<8x128xf32>
    %26 = arith.addf %23, %25 : vector<8x128xf32>
    %c0_19 = arith.constant 0 : index
    %c0_20 = arith.constant 0 : index
    %27 = vector.load %arg7[%c0_19, %c0_20] : memref<8x128xf32, #tpu.memory_space<vmem>>, vector<8x128xf32>
    tpu.vector_store %arg7[%c0_19, %c0_20], %26 {strides = array<i32>} : memref<8x128xf32, #tpu.memory_space<vmem>>, vector<8x128xf32>,
    %c0_i32_21 = arith.constant 0 : i32
    %28 = arith.cmpi eq, %arg1, %c0_i32_21 : i32
    %29 = arith.extui %28 : i1 to i32
    %c0_i32_22 = arith.constant 0 : i32
    %30 = arith.cmpi ne, %29, %c0_i32_22 : i32
    scf.if %30 {
      %c0_23 = arith.constant 0 : index
      %c0_24 = arith.constant 0 : index
      %31 = vector.load %arg5[%c0_23, %c0_24] : memref<8x128xf32, #tpu.memory_space<vmem>>, vector<8x128xf32>
      %32 = vector.shape_cast %31 : vector<8x128xf32> to vector<1x8x128xf32>
      %cst_25 = arith.constant dense<0.000000e+00> : vector<1xf32>
      %33 = vector.multi_reduction <add>, %32, %cst_25 [1, 2] : vector<1x8x128xf32> to vector<1xf32>
      %34 = vector.shape_cast %33 : vector<1xf32> to vector<1x1x1xf32>
      %35 = vector.extract %34[0, 0, 0] : f32 from vector<1x1x1xf32>
      %c0_26 = arith.constant 0 : index
      %c0_27 = arith.constant 0 : index
      %36 = vector.load %arg6[%c0_26, %c0_27] : memref<8x128xf32, #tpu.memory_space<vmem>>, vector<8x128xf32>
      %37 = vector.shape_cast %36 : vector<8x128xf32> to vector<1x8x128xf32>
      %cst_28 = arith.constant dense<0.000000e+00> : vector<1xf32>
      %38 = vector.multi_reduction <add>, %37, %cst_28 [1, 2] : vector<1x8x128xf32> to vector<1xf32>
      %39 = vector.shape_cast %38 : vector<1xf32> to vector<1x1x1xf32>
      %40 = vector.extract %39[0, 0, 0] : f32 from vector<1x1x1xf32>
      %c0_29 = arith.constant 0 : index
      %c0_30 = arith.constant 0 : index
      %41 = vector.load %arg7[%c0_29, %c0_30] : memref<8x128xf32, #tpu.memory_space<vmem>>, vector<8x128xf32>
      %42 = vector.shape_cast %41 : vector<8x128xf32> to vector<1x8x128xf32>
      %cst_31 = arith.constant dense<0.000000e+00> : vector<1xf32>
      %43 = vector.multi_reduction <add>, %42, %cst_31 [1, 2] : vector<1x8x128xf32> to vector<1xf32>
      %44 = vector.shape_cast %43 : vector<1xf32> to vector<1x1x1xf32>
      %45 = vector.extract %44[0, 0, 0] : f32 from vector<1x1x1xf32>
      %cst_32 = arith.constant 1.000000e-03 : f32
      %46 = arith.addf %35, %cst_32 : f32
      %cst_33 = arith.constant 2.000000e+00 : f32
      %47 = arith.mulf %cst_33, %46 : f32
      %48 = arith.addf %40, %45 : f32
      %cst_34 = arith.constant 1.000000e-03 : f32
      %49 = arith.addf %48, %cst_34 : f32
      %50 = arith.divf %47, %49 : f32
      %51 = vector.broadcast %50 : f32 to vector<8x128xf32>
      %c0_35 = arith.constant 0 : index
      %c0_36 = arith.constant 0 : index
      %c0_37 = arith.constant 0 : index
      %52 = vector.load %arg4[%c0_35, %c0_36, %c0_37] : memref<1x8x128xf32, #tpu.memory_space<vmem>>, vector<1x8x128xf32>
      %53 = vector.shape_cast %52 : vector<1x8x128xf32> to vector<8x128xf32>
      %54 = vector.shape_cast %51 : vector<8x128xf32> to vector<1x8x128xf32>
      tpu.vector_store %arg4[%c0_35, %c0_36, %c0_37], %54 {strides = array<i32>} : memref<1x8x128xf32, #tpu.memory_space<vmem>>, vector<1x8x128xf32>,
    } else {
    }
    return
  }
  func.func @transform_0(%arg0: i32, %arg1: i32) -> (i32, i32, i32) {
    %c0_i32 = arith.constant 0 : i32
    %c0_i32_0 = arith.constant 0 : i32
    return %arg0, %arg1, %c0_i32 : i32, i32, i32
  }
  func.func @transform_1(%arg0: i32, %arg1: i32) -> (i32, i32, i32) {
    %c0_i32 = arith.constant 0 : i32
    %c0_i32_0 = arith.constant 0 : i32
    return %arg0, %arg1, %c0_i32 : i32, i32, i32
  }
  func.func @transform_2(%arg0: i32, %arg1: i32) -> (i32, i32, i32) {
    %c0_i32 = arith.constant 0 : i32
    %c0_i32_0 = arith.constant 0 : i32
    %c0_i32_1 = arith.constant 0 : i32
    return %arg0, %c0_i32, %c0_i32_0 : i32, i32, i32
  }
}

</mosaic_0001>

<llo_original>
// kernel: tpu_custom_call.1
$region0: #{tpu_custom_call.1}
  #allocation0 [shape = 'u32[]', space=smem, size = 0x4, offset = 0x4, fixed_abs, tag = 'smem constant byte address 0x4 - core index']
  #allocation1 [shape = 'u32[144,128]{1,0:T(1,128)}', space=vmem, size = 0x12000, scoped, tag = 'internal scratch']
  #allocation2 [shape = 'f32[8,128]{1,0:T(8,128)}', space=vmem, size = 0x1000, scoped, tag = 'scratch operand']
  #allocation3 [shape = 'f32[8,128]{1,0:T(8,128)}', space=vmem, size = 0x1000, scoped, tag = 'scratch operand']
  #allocation4 [shape = 'f32[8,128]{1,0:T(8,128)}', space=vmem, size = 0x1000, scoped, tag = 'scratch operand']
  %s0 = inlined_call_operand.hbm [shape: f32[2,8,128], index: 0, kind: input, shape index: {}]
  %s1 = inlined_call_operand.hbm [shape: f32[2,8,128], index: 1, kind: input, shape index: {}]
  %s2 = inlined_call_operand.hbm [shape: f32[2,8,128], index: 2, kind: output, shape index: {}]
  %s3 = sld [smem:[#allocation0]]
  $region57: #{tpu_custom_call.1} parent=0
    _
  %s5 = ssub.s32 1, %s3
  %s6 = scalar_select 0, %s5, %s3
  $region1: #{tpu_custom_call.1} parent=0
    #allocation5 [shape = 'u8[8192]{0}', space=vmem, size = 0x2000, scoped, tag = 'input window, operand 0']
    #allocation6 [shape = 's32[2]{0}', space=sflag, size = 0x8, scoped, tag = 'scoped memory for tpu_custom_call.1']
    #allocation7 [shape = 's32[2]{0}', space=sflag, size = 0x8, scoped, tag = 'scoped memory for tpu_custom_call.1']
    #allocation8 [shape = 'u8[8192]{0}', space=vmem, size = 0x2000, scoped, tag = 'input window, operand 1']
    #allocation9 [shape = 's32[2]{0}', space=sflag, size = 0x8, scoped, tag = 'scoped memory for tpu_custom_call.1']
    #allocation10 [shape = 'u8[8192]{0}', space=vmem, size = 0x2000, scoped, tag = 'output window, operand 0']
    %7 = vsyncpa [#allocation6], 0
    %s8 = scalar_lea.sflag [#allocation6], 1
    %9 = vsyncpa %s8, 0
    %10 = vsyncpa [#allocation9], 0
    %s11 = scalar_lea.sflag [#allocation9], 1
    %12 = vsyncpa %s11, 0
    %13 = vsyncpa [#allocation7], 0
    %s14 = scalar_lea.sflag [#allocation7], 1
    %15 = vsyncpa %s14, 0
    loop: start=0, step=1, limit=4
    $region2: #{tpu_custom_call.1} parent=1 // loop_pre_header
      _
    $region3: #{tpu_custom_call.1} parent=1 // loop_header
      %s17 = sphi 0, %s21
      %p18 = scmp.ge.s32.totalorder %s17, 4
      %s24 = sphi 0, %s36
      %s25 = sphi 0, %s32
      %s26 = sphi 0, %s24
      %s27 = sphi 0, %s25
      %s28 = sphi 0, %s26
      %s29 = sphi 0, %s27
      %s41 = sphi 0, %s43
      %s44 = sphi 0, %s41
      %s45 = sphi 0, %s44
      %s61 = sphi 0, %s45
      %s69 = sphi 0, %s71
      %s72 = sphi 0, %s69
      %s73 = sphi 0, %s72
      %s89 = sphi 0, %s73
      %s95 = sphi 0, %s97
      %s98 = sphi 0, %s95
      %s99 = sphi 0, %s98
      %s115 = sphi 0, %s99
    $region4: #{tpu_custom_call.1} parent=1 // loop_header_branch
      %20 = sbr.rel (%p18) target = $region8
    $region5: #{tpu_custom_call.1} parent=1 // loop_body
      %s22 = ssub.s32 %s17, 1
      %s23 = ssub.s32 %s17, 2
      %s30 = sadd.s32 1, %s25
      %p31 = scmp.ge.s32.totalorder %s30, 1
      %s32 = scalar_select %p31, 0, %s30
      %s33 = sadd.s32 1, %s24
      %s34 = scalar_select %p31, %s33, %s24
      %p35 = scmp.ge.s32.totalorder %s34, 2
      %s36 = scalar_select %p35, 0, %s34
      %s37 = ssub.s32 %s24, %s36
      %s38 = ssub.s32 %s25, %s32
      %s39 = sor.u32 %s37, %s38
      %p40 = scmp.eq.s32.totalorder %s39, 0
      %s42 = sadd.s32 %s41, 1
      %s43 = scalar_select %p40, %s41, %s42
      %p46 = pneg %p40
      %p47 = scmp.eq.s32.totalorder %s17, 1
      %p48 = por %p46, %p47
      %p49 = scmp.ne.s32.totalorder %s41, %s44
      %p50 = scmp.eq.s32.totalorder %s17, 0
      %p51 = por %p49, %p50
      %p52 = scmp.ne.s32.totalorder %s41, %s44
      %p53 = scmp.eq.s32.totalorder %s22, 1
      %p54 = por %p52, %p53
      %p55 = scmp.ne.s32.totalorder %s44, %s45
      %p56 = scmp.eq.s32.totalorder %s22, 0
      %p57 = por %p55, %p56
      %p58 = scmp.ne.s32.totalorder %s44, %s45
      %p59 = scmp.eq.s32.totalorder %s23, 1
      %p60 = por %p58, %p59
      %p62 = scmp.ne.s32.totalorder %s45, %s61
      %p63 = scmp.eq.s32.totalorder %s23, 0
      %p64 = por %p62, %p63
      %s65 = ssub.s32 %s24, %s36
      %s66 = ssub.s32 %s25, %s32
      %s67 = sor.u32 %s65, %s66
      %p68 = scmp.eq.s32.totalorder %s67, 0
      %s70 = sadd.s32 %s69, 1
      %s71 = scalar_select %p68, %s69, %s70
      %p74 = pneg %p68
      %p75 = scmp.eq.s32.totalorder %s17, 1
      %p76 = por %p74, %p75
      %p77 = scmp.ne.s32.totalorder %s69, %s72
      %p78 = scmp.eq.s32.totalorder %s17, 0
      %p79 = por %p77, %p78
      %p80 = scmp.ne.s32.totalorder %s69, %s72
      %p81 = scmp.eq.s32.totalorder %s22, 1
      %p82 = por %p80, %p81
      %p83 = scmp.ne.s32.totalorder %s72, %s73
      %p84 = scmp.eq.s32.totalorder %s22, 0
      %p85 = por %p83, %p84
      %p86 = scmp.ne.s32.totalorder %s72, %s73
      %p87 = scmp.eq.s32.totalorder %s23, 1
      %p88 = por %p86, %p87
      %p90 = scmp.ne.s32.totalorder %s73, %s89
      %p91 = scmp.eq.s32.totalorder %s23, 0
      %p92 = por %p90, %p91
      %s93 = ssub.s32 %s24, %s36
      %p94 = scmp.eq.s32.totalorder %s93, 0
      %s96 = sadd.s32 %s95, 1
      %s97 = scalar_select %p94, %s95, %s96
      %p100 = pneg %p94
      %p101 = scmp.eq.s32.totalorder %s17, 1
      %p102 = por %p100, %p101
      %p103 = scmp.ne.s32.totalorder %s95, %s98
      %p104 = scmp.eq.s32.totalorder %s17, 0
      %p105 = por %p103, %p104
      %p106 = scmp.ne.s32.totalorder %s95, %s98
      %p107 = scmp.eq.s32.totalorder %s22, 1
      %p108 = por %p106, %p107
      %p109 = scmp.ne.s32.totalorder %s98, %s99
      %p110 = scmp.eq.s32.totalorder %s22, 0
      %p111 = por %p109, %p110
      %p112 = scmp.ne.s32.totalorder %s98, %s99
      %p113 = scmp.eq.s32.totalorder %s23, 1
      %p114 = por %p112, %p113
      %p116 = scmp.ne.s32.totalorder %s99, %s115
      %p117 = scmp.eq.s32.totalorder %s23, 0
      %p118 = por %p116, %p117
      %p119 = scmp.le.s32.totalorder 1, %s17
      %p120 = scmp.lt.s32.totalorder %s17, 3
      %p121 = pnand %p119, %p120
      %p122 = pneg %p121
      // Predicated region
      $region9: #{tpu_custom_call.1} parent=5 // pred_check
        _
      $region10: #{tpu_custom_call.1} parent=5 // pred_check_branch
        %124 = sbr.rel (%p121) target = $region12
      $region11: #{tpu_custom_call.1} parent=5 // pred_region
        %s125 = ssub.s32 %s17, 1
      $region12: #{tpu_custom_call.1} parent=5 // pred_fallthru
        _
      %p126 = scmp.lt.s32.totalorder %s17, 2
      // Predicated region
      $region13: #{tpu_custom_call.1} parent=5 // pred_check
        %p127 = pneg %p126
      $region14: #{tpu_custom_call.1} parent=5 // pred_check_branch
        %129 = sbr.rel (%p127) target = $region16
      $region15: #{tpu_custom_call.1} parent=5 // pred_region
        // Predicated region
        $region17: #{tpu_custom_call.1} parent=15 // pred_check
          %p130 = pneg %p51
        $region18: #{tpu_custom_call.1} parent=15 // pred_check_branch
          %132 = sbr.rel (%p130) target = $region20
        $region19: #{tpu_custom_call.1} parent=15 // pred_region
          %s133 = sand.u32 %s41, 1
          %s134 = scalar_lea.sflag [#allocation6], %s133
          %s135 = sand.u32 %s41, 1
          %s136 = smul.addr %s135, 8
          %s137 = scalar_lea.vmem [#allocation5], %s136
          %s139 = ssub.s32 128, 128
          %140 = vsyncadd %s134, %s139
          %s141 = sadd.s32 %s25, %s24
          %s142 = smul.addr %s141, 128
          %s143 = scalar_lea.hbm %s0, %s142
          %s145 = sshll.u32 %s137, 4
          %s146 = int_to_ptr.vmem [resolvable:$true] %s145
          %148 = dma.hbm_to_vmem [thread:$0]  %s143, 128, %s146, %s134
        $region20: #{tpu_custom_call.1} parent=15 // pred_fallthru
          _
        // Predicated region
        $region21: #{tpu_custom_call.1} parent=15 // pred_check
          %p149 = pneg %p79
        $region22: #{tpu_custom_call.1} parent=15 // pred_check_branch
          %151 = sbr.rel (%p149) target = $region24
        $region23: #{tpu_custom_call.1} parent=15 // pred_region
          %s152 = sand.u32 %s69, 1
          %s153 = scalar_lea.sflag [#allocation9], %s152
          %s154 = sand.u32 %s69, 1
          %s155 = smul.addr %s154, 8
          %s156 = scalar_lea.vmem [#allocation8], %s155
          %s158 = ssub.s32 128, 128
          %159 = vsyncadd %s153, %s158
          %s160 = sadd.s32 %s25, %s24
          %s161 = smul.addr %s160, 128
          %s162 = scalar_lea.hbm %s1, %s161
          %s164 = sshll.u32 %s156, 4
          %s165 = int_to_ptr.vmem [resolvable:$true] %s164
          %167 = dma.hbm_to_vmem [thread:$0]  %s162, 128, %s165, %s153
        $region24: #{tpu_custom_call.1} parent=15 // pred_fallthru
          _
      $region16: #{tpu_custom_call.1} parent=5 // pred_fallthru
        _
      %p168 = scmp.le.s32.totalorder 1, %s17
      %p169 = scmp.lt.s32.totalorder %s17, 3
      %p170 = pnand %p168, %p169
      %p171 = pneg %p170
      // Predicated region
      $region25: #{tpu_custom_call.1} parent=5 // pred_check
        _
      $region26: #{tpu_custom_call.1} parent=5 // pred_check_branch
        %173 = sbr.rel (%p170) target = $region28
      $region27: #{tpu_custom_call.1} parent=5 // pred_region
        %s174 = ssub.s32 %s17, 1
        %s175 = sand.u32 %s44, 1
        %s176 = scalar_lea.sflag [#allocation6], %s175
        %s177 = sand.u32 %s44, 1
        %s178 = smul.addr %s177, 8
        %s179 = scalar_lea.vmem [#allocation5], %s178
        // Predicated region
        $region29: #{tpu_custom_call.1} parent=27 // pred_check
          %p180 = pneg %p57
        $region30: #{tpu_custom_call.1} parent=27 // pred_check_branch
          %182 = sbr.rel (%p180) target = $region32
        $region31: #{tpu_custom_call.1} parent=27 // pred_region
          %183 = dma.done %s176, 128
        $region32: #{tpu_custom_call.1} parent=27 // pred_fallthru
          _
        %s184 = sand.u32 %s72, 1
        %s185 = scalar_lea.sflag [#allocation9], %s184
        %s186 = sand.u32 %s72, 1
        %s187 = smul.addr %s186, 8
        %s188 = scalar_lea.vmem [#allocation8], %s187
        // Predicated region
        $region33: #{tpu_custom_call.1} parent=27 // pred_check
          %p189 = pneg %p85
        $region34: #{tpu_custom_call.1} parent=27 // pred_check_branch
          %191 = sbr.rel (%p189) target = $region36
        $region35: #{tpu_custom_call.1} parent=27 // pred_region
          %192 = dma.done %s185, 128
        $region36: #{tpu_custom_call.1} parent=27 // pred_fallthru
          _
        %s193 = sand.u32 %s44, 1
        %s194 = scalar_lea.sflag [#allocation6], %s193
        %s195 = sand.u32 %s44, 1
        %s196 = smul.addr %s195, 8
        %s197 = scalar_lea.vmem [#allocation5], %s196
        %p198 = pneg %p57
        %p199 = pneg %p54
        %s200 = sand.u32 %s72, 1
        %s201 = scalar_lea.sflag [#allocation9], %s200
        %s202 = sand.u32 %s72, 1
        %s203 = smul.addr %s202, 8
        %s204 = scalar_lea.vmem [#allocation8], %s203
        %p205 = pneg %p85
        %p206 = pneg %p82
        %p207 = pneg %p111
        %p208 = pneg %p108
        %s209 = sand.u32 %s98, 1
        %s210 = scalar_lea.sflag [#allocation7], %s209
        %s211 = sand.u32 %s98, 1
        %s212 = smul.addr %s211, 8
        %s213 = scalar_lea.vmem [#allocation10], %s212
        %p214 = scmp.eq.s32.totalorder %s27, 0
        // Predicated region
        $region37: #{tpu_custom_call.1} parent=27 // pred_check
          %p215 = pneg %p214
        $region38: #{tpu_custom_call.1} parent=27 // pred_check_branch
          %217 = sbr.rel (%p215) target = $region40
        $region39: #{tpu_custom_call.1} parent=27 // pred_region
          %218 = vst [vmem:[#allocation2] sm:$0xff] 0.0
          %219 = vst [vmem:[#allocation3] sm:$0xff] 0.0
          %220 = vst [vmem:[#allocation4] sm:$0xff] 0.0
        $region40: #{tpu_custom_call.1} parent=27 // pred_fallthru
          _
        %v221 = vld [vmem:[%s179] sm:$0xff]
        %v222 = vld [vmem:[%s188] sm:$0xff]
        %v223 = vxor.u32 %v221, 2147483648
        %v224 = vmul.f32 %v223, 1.442695
        %v225 = vpow.pop %v224
        %v226 = vadd.f32 %v225, 1.0
        %v227 = vrcp.pop %v226
        %v228 = vmul.f32 1.0, %v227
        %v229 = vmul.f32 %v228, %v222
        %v230 = vld [vmem:[#allocation2] sm:$0xff]
        %v231 = vadd.f32 %v229, 0.0
        %v232 = vadd.f32 %v230, %v231
        %233 = vst [vmem:[#allocation2] sm:$0xff] %v232
        %v234 = vld [vmem:[#allocation3] sm:$0xff]
        %v235 = vadd.f32 %v228, 0.0
        %v236 = vadd.f32 %v234, %v235
        %237 = vst [vmem:[#allocation3] sm:$0xff] %v236
        %v238 = vld [vmem:[#allocation4] sm:$0xff]
        %v239 = vadd.f32 %v222, 0.0
        %v240 = vadd.f32 %v238, %v239
        %241 = vst [vmem:[#allocation4] sm:$0xff] %v240
        // Predicated region
        $region41: #{tpu_custom_call.1} parent=27 // pred_check
          %p242 = pneg %p214
        $region42: #{tpu_custom_call.1} parent=27 // pred_check_branch
          %244 = sbr.rel (%p242) target = $region44
        $region43: #{tpu_custom_call.1} parent=27 // pred_region
          %v245 = vld [vmem:[#allocation2] sm:$0xff]
          %246 = vadd.xlane.f32.xlu0 %v245
          %v247 = vpop.xlane.xlu0 %246
          %v248 = vrot.slane %v247, 4
          %v249 = vadd.f32 %v247, %v248
          %v250 = vrot.slane %v249, 2
          %v251 = vadd.f32 %v249, %v250
          %v252 = vrot.slane %v251, 1
          %v253 = vadd.f32 %v251, %v252
          %s254 = vtos %v253
          %v255 = vld [vmem:[#allocation3] sm:$0xff]
          %256 = vadd.xlane.f32.xlu0 %v255
          %v257 = vpop.xlane.xlu0 %256
          %v258 = vrot.slane %v257, 4
          %v259 = vadd.f32 %v257, %v258
          %v260 = vrot.slane %v259, 2
          %v261 = vadd.f32 %v259, %v260
          %v262 = vrot.slane %v261, 1
          %v263 = vadd.f32 %v261, %v262
          %s264 = vtos %v263
          %v265 = vld [vmem:[#allocation4] sm:$0xff]
          %266 = vadd.xlane.f32.xlu0 %v265
          %v267 = vpop.xlane.xlu0 %266
          %v268 = vrot.slane %v267, 4
          %v269 = vadd.f32 %v267, %v268
          %v270 = vrot.slane %v269, 2
          %v271 = vadd.f32 %v269, %v270
          %v272 = vrot.slane %v271, 1
          %v273 = vadd.f32 %v271, %v272
          %s274 = vtos %v273
          %s275 = sadd.f32 %s254, 0.001
          %s276 = smul.f32 %s275, 2.0
          %s277 = sadd.f32 %s264, %s274
          %s278 = sadd.f32 %s277, 0.001
          %v279 = vstv %s278
          %v280 = vrcp.pop %v279
          %s281 = vtos %v280
          %s282 = smul.f32 %s276, %s281
          %v283 = vstv %s282
          %284 = vst [vmem:[%s213] sm:$0xff] %v283
        $region44: #{tpu_custom_call.1} parent=27 // pred_fallthru
          _
        %s285 = sand.u32 %s98, 1
        %s286 = scalar_lea.sflag [#allocation7], %s285
        %s287 = sand.u32 %s98, 1
        %s288 = smul.addr %s287, 8
        %s289 = scalar_lea.vmem [#allocation10], %s288
        // Predicated region
        $region45: #{tpu_custom_call.1} parent=27 // pred_check
          %p290 = pneg %p108
        $region46: #{tpu_custom_call.1} parent=27 // pred_check_branch
          %292 = sbr.rel (%p290) target = $region48
        $region47: #{tpu_custom_call.1} parent=27 // pred_region
          %s294 = ssub.s32 128, 128
          %295 = vsyncadd %s286, %s294
          %s296 = smul.addr %s26, 128
          %s297 = scalar_lea.hbm %s2, %s296
          %s299 = sshll.u32 %s289, 4
          %s300 = int_to_ptr.vmem [resolvable:$true] %s299
          %302 = dma.vmem_to_hbm [thread:$0]  %s300, 128, %s297, %s286
        $region48: #{tpu_custom_call.1} parent=27 // pred_fallthru
          _
      $region28: #{tpu_custom_call.1} parent=5 // pred_fallthru
        _
      %p303 = scmp.le.s32.totalorder 2, %s17
      // Predicated region
      $region49: #{tpu_custom_call.1} parent=5 // pred_check
        %p304 = pneg %p303
      $region50: #{tpu_custom_call.1} parent=5 // pred_check_branch
        %306 = sbr.rel (%p304) target = $region52
      $region51: #{tpu_custom_call.1} parent=5 // pred_region
        %s307 = ssub.s32 %s17, 2
        // Predicated region
        $region53: #{tpu_custom_call.1} parent=51 // pred_check
          %p308 = pneg %p114
        $region54: #{tpu_custom_call.1} parent=51 // pred_check_branch
          %310 = sbr.rel (%p308) target = $region56
        $region55: #{tpu_custom_call.1} parent=51 // pred_region
          %s311 = sand.u32 %s99, 1
          %s312 = scalar_lea.sflag [#allocation7], %s311
          %s313 = sand.u32 %s99, 1
          %s314 = smul.addr %s313, 8
          %s315 = scalar_lea.vmem [#allocation10], %s314
          %316 = dma.done %s312, 128
        $region56: #{tpu_custom_call.1} parent=51 // pred_fallthru
          _
      $region52: #{tpu_custom_call.1} parent=5 // pred_fallthru
        _
    $region6: #{tpu_custom_call.1} parent=1 // loop_footer
      %s21 = sadd.s32 1, %s17
    $region7: #{tpu_custom_call.1} parent=1 // loop_footer_branch
      %16 = sbr.rel target = $region3
    $region8: #{tpu_custom_call.1} parent=1 // loop_exit
      _
    %317 = vsyncpa [#allocation6], 1
    %s318 = scalar_lea.sflag [#allocation6], 1
    %319 = vsyncpa %s318, 1
    %320 = vsyncpa [#allocation9], 1
    %s321 = scalar_lea.sflag [#allocation9], 1
    %322 = vsyncpa %s321, 1
    %323 = vsyncpa [#allocation7], 1
    %s324 = scalar_lea.sflag [#allocation7], 1
    %325 = vsyncpa %s324, 1

</llo_original>
